<compile_context>
chip_gen: v5e
topology: v5e:2x2
jax: 0.10.0
libtpu: 0.0.40
codegen_flags: <defaults>
</compile_context>

<pallas_src>
import functools

import numpy as np

import jax
import jax.numpy as jnp
from jax.experimental import pallas as pl
from jax.experimental.pallas import tpu as pltpu


# ----------------------------------------------------------------------------
# Pallas kernels: fused (input-activation -> matmul -> +bias -> optional tanh)
# ----------------------------------------------------------------------------
def _act(a, act):
    if act == "lrelu":
        return jnp.where(a > 0, a, a * 0.2)          # bf16-native LeakyReLU(0.2)
    if act == "relu":
        return jnp.maximum(a, 0)
    return a


def _mm_kernel_single(a_ref, b_ref, bias_ref, o_ref, *, act_in, act_out):
    """Single reduction step: no accumulator scratch, 2-D (parallel) grid."""
    a = _act(a_ref[...], act_in)
    y = jnp.dot(a, b_ref[...], preferred_element_type=jnp.float32) + bias_ref[...]
    if act_out == "tanh":
        y = jnp.tanh(y)
    o_ref[...] = y.astype(o_ref.dtype)


def _mm_kernel_acc(a_ref, b_ref, bias_ref, o_ref, acc_ref, *, act_in, act_out):
    """Multi-step reduction over the K grid axis with an f32 VMEM accumulator."""
    @pl.when(pl.program_id(2) == 0)
    def _init():
        acc_ref[...] = jnp.zeros_like(acc_ref)

    a = _act(a_ref[...], act_in)
    acc_ref[...] += jnp.dot(a, b_ref[...], preferred_element_type=jnp.float32)

    @pl.when(pl.program_id(2) == pl.num_programs(2) - 1)
    def _fin():
        y = acc_ref[...] + bias_ref[...]
        if act_out == "tanh":
            y = jnp.tanh(y)
        o_ref[...] = y.astype(o_ref.dtype)


# ----------------------------------------------------------------------------
# Tile selection
# ----------------------------------------------------------------------------
_SUB = 16                      # sublane quantum (safe for bf16 blocks)
_LANE = 128
_MAX_TM = 1024
_MAX_TN = 1024
_A_BUDGET = 10 * 2**20         # double-buffered bf16 A tile
_B_BUDGET = 16 * 2**20         # double-buffered bf16 B (weight) tile
_VMEM_LIMIT = 48 * 2**20


def _round_up(x, m):
    return (x + m - 1) // m * m


def _choose_tiles(M, K, N):
    Mp = _round_up(M, _SUB)
    Kp0 = _round_up(K, _LANE)
    Np0 = _round_up(N, _LANE)

    tm = min(Mp, _MAX_TM)
    tn = min(Np0, _MAX_TN)

    def tk_of(nk):
        return _round_up(-(-Kp0 // nk), _LANE)

    # Fewest K steps such that the double-buffered bf16 A and B tiles fit the
    # VMEM budgets.  For small-M (weight-streaming) layers prefer narrowing the
    # N tile (A is tiny there) so the reduction stays a single step.
    nk = 1
    while True:
        tk = tk_of(nk)
        a_ok = 2 * tm * tk * 2 <= _A_BUDGET
        b_ok = 2 * tk * tn * 2 <= _B_BUDGET
        if a_ok and b_ok:
            break
        if (not b_ok) and Mp <= Np0 and tn >= 256 and (tn // 2) % _LANE == 0:
            tn //= 2
            continue
        if tk <= _LANE:
            break
        nk += 1
    tk = tk_of(nk)

    # Guarantee >=2 blocks on a *parallel* grid axis (both v7x TensorCores get
    # work); split whichever operand is cheaper to re-stream.  Harmless on the
    # single-TC v5e/v6e generations (one extra grid step).
    if Mp <= tm and Np0 <= tn:
        if Kp0 * Np0 <= Mp * Kp0 and tm >= 2 * _SUB and (tm // 2) % _SUB == 0:
            tm //= 2
        elif tn >= 256 and (tn // 2) % _LANE == 0:
            tn //= 2
        elif tm >= 2 * _SUB and (tm // 2) % _SUB == 0:
            tm //= 2

    Mp = _round_up(Mp, tm)
    Kp = tk * nk
    Np = _round_up(Np0, tn)
    return tm, tk, tn, Mp, Kp, Np


def matmul_bias_act(a, w, bias, act_in="none", act_out="none",
                    out_dtype=jnp.bfloat16):
    """a: (M, K) bf16 patches, w: (K, N) bf16, bias: (N,) -> (M, N) out_dtype."""
    M, K = a.shape
    Kw, N = w.shape
    assert K == Kw, (K, Kw)
    assert bias.shape == (N,), (bias.shape, N)

    tm, tk, tn, Mp, Kp, Np = _choose_tiles(M, K, N)
    if (Mp, Kp) != (M, K):
        a = jnp.pad(a, ((0, Mp - M), (0, Kp - K)))
    if (Kp, Np) != (K, N):
        w = jnp.pad(w, ((0, Kp - K), (0, Np - N)))
    b = bias.astype(jnp.float32)
    if Np != N:
        b = jnp.pad(b, (0, Np - N))
    b = b.reshape(1, Np)

    ni, nj, nk = Mp // tm, Np // tn, Kp // tk

    if nk == 1:
        out = pl.pallas_call(
            functools.partial(_mm_kernel_single, act_in=act_in, act_out=act_out),
            out_shape=jax.ShapeDtypeStruct((Mp, Np), out_dtype),
            grid_spec=pltpu.PrefetchScalarGridSpec(
                num_scalar_prefetch=0,
                grid=(ni, nj),
                in_specs=[
                    pl.BlockSpec((tm, tk), lambda i, j: (i, 0)),
                    pl.BlockSpec((tk, tn), lambda i, j: (0, j)),
                    pl.BlockSpec((1, tn), lambda i, j: (0, j)),
                ],
                out_specs=pl.BlockSpec((tm, tn), lambda i, j: (i, j)),
            ),
            compiler_params=pltpu.CompilerParams(
                dimension_semantics=("parallel", "parallel"),
                vmem_limit_bytes=_VMEM_LIMIT,
            ),
        )(a, w, b)
    else:
        out = pl.pallas_call(
            functools.partial(_mm_kernel_acc, act_in=act_in, act_out=act_out),
            out_shape=jax.ShapeDtypeStruct((Mp, Np), out_dtype),
            grid_spec=pltpu.PrefetchScalarGridSpec(
                num_scalar_prefetch=0,
                grid=(ni, nj, nk),
                in_specs=[
                    pl.BlockSpec((tm, tk), lambda i, j, k: (i, k)),
                    pl.BlockSpec((tk, tn), lambda i, j, k: (k, j)),
                    pl.BlockSpec((1, tn), lambda i, j, k: (0, j)),
                ],
                out_specs=pl.BlockSpec((tm, tn), lambda i, j, k: (i, j)),
                scratch_shapes=[pltpu.VMEM((tm, tn), jnp.float32)],
            ),
            compiler_params=pltpu.CompilerParams(
                dimension_semantics=("parallel", "parallel", "arbitrary"),
                vmem_limit_bytes=_VMEM_LIMIT,
            ),
        )(a, w, b)

    if (Mp, Np) != (M, N):
        out = out[:M, :N]
    return out


# ----------------------------------------------------------------------------
# Weight packing (done ONCE, outside the forward pass)
# ----------------------------------------------------------------------------
_ENC1_CIN = 8   # enc1 input channels padded 3 -> 8 so K = 16*8 = 128


def conv_weight_matrix(w):
    """torch Conv2d weight (Cout, Cin, 4, 4) -> (16*Cin, Cout)."""
    cin, cout = w.shape[1], w.shape[0]
    return jnp.transpose(w, (2, 3, 1, 0)).reshape(16 * cin, cout)


def _subpixel_selector():
    # S[dy, dx, a, b, ky, kx] = 1 iff kernel tap (ky, kx) contributes to output
    # phase (a, b) from input offset (dy-1, dx-1).  (kernel 4, stride 2, pad 1)
    S = np.zeros((3, 3, 2, 2, 4, 4), np.float32)
    tap = {(0, 3): 0, (0, 1): 1, (1, 2): 1, (1, 0): 2}
    for a in (0, 1):
        for b in (0, 1):
            for ky in ((3, 1) if a == 0 else (2, 0)):
                for kx in ((3, 1) if b == 0 else (2, 0)):
                    S[tap[(a, ky)], tap[(b, kx)], a, b, ky, kx] = 1.0
    return S


_SUBPIX = jnp.asarray(_subpixel_selector())


def deconv_weight_matrix(w):
    """torch ConvTranspose2d weight (Cin, Cout, 4, 4) -> (9*Cin, 4*Cout)."""
    cin, cout = w.shape[0], w.shape[1]
    wb = jnp.einsum("DEabkl,iokl->DEiabo", _SUBPIX, w)     # (3,3,Cin,2,2,Cout)
    return wb.reshape(9 * cin, 4 * cout)


# ----------------------------------------------------------------------------
# Conv / sub-pixel ConvTranspose (kernel=4, stride=2, padding=1)
# ----------------------------------------------------------------------------
def conv_down(x, wmat, bias, act_in="none", act_out="none",
              out_dtype=jnp.bfloat16):
    """x: NHWC (pre-activation); the activation is fused inside the kernel."""
    # TODO(synk): im2col still materialized in HBM; fuse into the pallas_call.
    n, H, W, C = x.shape
    OH, OW = H // 2, W // 2
    xp = jnp.pad(x, ((0, 0), (1, 1), (1, 1), (0, 0)))
    cols = [xp[:, kh:kh + 2 * OH - 1:2, kw:kw + 2 * OW - 1:2, :]
            for kh in range(4) for kw in range(4)]
    patches = jnp.stack(cols, axis=3).reshape(n * OH * OW, 16 * C)
    patches = patches.astype(jnp.bfloat16)
    out = matmul_bias_act(patches, wmat, bias, act_in, act_out, out_dtype)
    return out.reshape(n, OH, OW, -1)


def deconv_up(xs, wmat, bias, act_in="relu", act_out="none",
              out_dtype=jnp.bfloat16):
    """Sub-pixel ConvTranspose2d: ONE matmul over 3x3 stride-1 patches emits
    all four output phases.  xs: list of NHWC sources (the skip concat is done
    at the patch level along K)."""
    n, H, W = xs[0].shape[:3]
    pats = []
    for x in xs:
        xp = jnp.pad(x, ((0, 0), (1, 1), (1, 1), (0, 0)))
        cols = [xp[:, dy:dy + H, dx:dx + W, :] for dy in range(3) for dx in range(3)]
        pats.append(jnp.stack(cols, axis=3).reshape(n * H * W, -1).astype(jnp.bfloat16))
    patches = pats[0] if len(pats) == 1 else jnp.concatenate(pats, axis=1)

    cout = wmat.shape[1] // 4
    bias4 = jnp.tile(bias.astype(jnp.float32), 4)          # one copy per phase
    out = matmul_bias_act(patches, wmat, bias4, act_in, act_out, out_dtype)
    out = out.reshape(n, H, W, 2, 2, cout)
    out = jnp.transpose(out, (0, 1, 3, 2, 4, 5)).reshape(n, 2 * H, 2 * W, cout)
    return out


# ----------------------------------------------------------------------------
# BatchNorm (train-mode batch stats, torch default) and Dropout2d
# ----------------------------------------------------------------------------
def bn_apply(y, gamma, beta, eps=1e-5):
    y32 = y.astype(jnp.float32)                      # f32 statistics
    mean = jnp.mean(y32, axis=(0, 1, 2))
    var = jnp.mean(jnp.square(y32 - mean), axis=(0, 1, 2))
    scale = gamma * jax.lax.rsqrt(var + eps)
    shift = beta - mean * scale
    return (y32 * scale + shift).astype(y.dtype)


def dropout2d(x, key, p=0.5):
    # TODO(synk): uses the JAX PRNG; cannot reproduce torch's RNG stream.
    keep = jax.random.bernoulli(key, 1.0 - p, (x.shape[0], 1, 1, x.shape[3]))
    return jnp.where(keep, x / (1.0 - p), 0.0)


# ----------------------------------------------------------------------------
# Parameters (torch layouts) and packing into matmul layouts
# ----------------------------------------------------------------------------
def init_params(key):
    keys = iter(jax.random.split(key, 40))

    def conv_p(cin, cout, bn=True):
        p = {"w": 0.02 * jax.random.normal(next(keys), (cout, cin, 4, 4), jnp.float32),
             "b": 0.01 * jax.random.normal(next(keys), (cout,), jnp.float32)}
        if bn:
            p["gamma"] = jnp.ones((cout,), jnp.float32)
            p["beta"] = jnp.zeros((cout,), jnp.float32)
        return p

    def deconv_p(cin, cout, bn=True):
        p = {"w": 0.02 * jax.random.normal(next(keys), (cin, cout, 4, 4), jnp.float32),
             "b": 0.01 * jax.random.normal(next(keys), (cout,), jnp.float32)}
        if bn:
            p["gamma"] = jnp.ones((cout,), jnp.float32)
            p["beta"] = jnp.zeros((cout,), jnp.float32)
        return p

    return {
        "enc1": conv_p(3, 64, bn=False),
        "enc2": conv_p(64, 128), "enc3": conv_p(128, 256), "enc4": conv_p(256, 512),
        "enc5": conv_p(512, 512), "enc6": conv_p(512, 512), "enc7": conv_p(512, 512),
        "enc8": conv_p(512, 512, bn=False),
        "dec8": deconv_p(512, 512), "dec7": deconv_p(1024, 512),
        "dec6": deconv_p(1024, 512), "dec5": deconv_p(1024, 512),
        "dec4": deconv_p(1024, 256), "dec3": deconv_p(512, 128),
        "dec2": deconv_p(256, 64), "dec1": deconv_p(128, 3, bn=False),
    }


# split = #channels of the decoder half of the skip concat cat([d, e], ch)
_DEC_SPLITS = {"dec8": None, "dec7": 512, "dec6": 512, "dec5": 512,
               "dec4": 512, "dec3": 256, "dec2": 128, "dec1": 64}


def pack_params(raw):
    packed = {}
    for name in ["enc1", "enc2", "enc3", "enc4", "enc5", "enc6", "enc7", "enc8"]:
        p = raw[name]
        w = p["w"]
        if name == "enc1" and w.shape[1] < _ENC1_CIN:   # pad Cin 3 -> 8 (K = 128)
            w = jnp.pad(w, ((0, 0), (0, _ENC1_CIN - w.shape[1]), (0, 0), (0, 0)))
        q = {"w": conv_weight_matrix(w).astype(jnp.bfloat16),
             "b": p["b"].astype(jnp.float32)}
        if "gamma" in p:
            q["gamma"], q["beta"] = p["gamma"], p["beta"]
        packed[name] = q
    for name, split in _DEC_SPLITS.items():
        p = raw[name]
        w = p["w"]
        if split is None:
            wm = deconv_weight_matrix(w)
        else:
            wm = jnp.concatenate([deconv_weight_matrix(w[:split]),
                                  deconv_weight_matrix(w[split:])], axis=0)
        q = {"w": wm.astype(jnp.bfloat16), "b": p["b"].astype(jnp.float32)}
        if "gamma" in p:
            q["gamma"], q["beta"] = p["gamma"], p["beta"]
        packed[name] = q
    return packed


# ----------------------------------------------------------------------------
# Full UNet forward (matches the PyTorch spec; train-mode BN / dropout)
# ----------------------------------------------------------------------------
def unet_forward(params, x_nchw, drop_key):
    P = params
    x = jnp.transpose(x_nchw, (0, 2, 3, 1)).astype(jnp.bfloat16)     # NCHW -> NHWC
    x = jnp.pad(x, ((0, 0), (0, 0), (0, 0), (0, _ENC1_CIN - x.shape[3])))

    def enc(name, xin, act):
        p = P[name]
        y = conv_down(xin, p["w"], p["b"], act_in=act)
        if "gamma" in p:
            y = bn_apply(y, p["gamma"], p["beta"])
        return y

    def dec(name, xs, act="relu", drop=None):
        p = P[name]
        y = deconv_up(xs, p["w"], p["b"], act_in=act)
        if "gamma" in p:
            y = bn_apply(y, p["gamma"], p["beta"])
        if drop is not None:
            y = dropout2d(y, drop)
        return y

    e1 = enc("enc1", x, "none")          # plain Conv2d (no lrelu, no BN)
    e2 = enc("enc2", e1, "lrelu")
    e3 = enc("enc3", e2, "lrelu")
    e4 = enc("enc4", e3, "lrelu")
    e5 = enc("enc5", e4, "lrelu")
    e6 = enc("enc6", e5, "lrelu")
    e7 = enc("enc7", e6, "lrelu")
    e8 = enc("enc8", e7, "lrelu")        # norm=False

    k8, k7, k6 = jax.random.split(drop_key, 3)

    d8 = dec("dec8", [e8], drop=k8)                  # relu(x) applies to whole input
    d7 = dec("dec7", [d8, e7], drop=k7)              # (decoder half first: cat([d, e]))
    d6 = dec("dec6", [d7, e6], drop=k6)
    d5 = dec("dec5", [d6, e5])
    d4 = dec("dec4", [d5, e4])
    d3 = dec("dec3", [d4, e3])
    d2 = jnp.maximum(dec("dec2", [d3, e2]), 0)       # F.relu(decoder2(...))
    # decoder1: plain ConvTranspose2d on cat([d2, e1]); tanh fused in the kernel.
    p1 = P["dec1"]
    d1 = deconv_up([d2, e1], p1["w"], p1["b"], act_in="none", act_out="tanh",
                   out_dtype=jnp.float32)

    return jnp.transpose(d1, (0, 3, 1, 2)).astype(jnp.float32)   # NHWC -> NCHW


# ----------------------------------------------------------------------------
# Self-checks of the conv / sub-pixel deconv lowering vs XLA convolutions
# ----------------------------------------------------------------------------
def _q(t):
    return t.astype(jnp.bfloat16).astype(jnp.float32)


def _selfchecks():
    k = jax.random.split(jax.random.PRNGKey(42), 8)

    # 1) encoder Conv2d(k=4, s=2, p=1) path.
    x = jax.random.normal(k[0], (1, 8, 6, 8), jnp.float32)
    w = 0.1 * jax.random.normal(k[1], (16, 8, 4, 4), jnp.float32)
    b = 0.1 * jax.random.normal(k[2], (16,), jnp.float32)
    got = conv_down(x.astype(jnp.bfloat16), conv_weight_matrix(w).astype(jnp.bfloat16),
                    b, act_in="none", out_dtype=jnp.float32)
    ref = jax.lax.conv_general_dilated(
        _q(x), jnp.transpose(_q(w), (2, 3, 1, 0)), (2, 2), ((1, 1), (1, 1)),
        dimension_numbers=("NHWC", "HWIO", "NHWC")) + b
    assert float(jnp.max(jnp.abs(got - ref))) < 1e-2, "conv lowering mismatch"

    # 2) decoder ConvTranspose2d(k=4, s=2, p=1) with skip-concat weight split.
    x1 = jax.random.normal(k[3], (1, 6, 5, 8), jnp.float32)
    x2 = jax.random.normal(k[4], (1, 6, 5, 8), jnp.float32)
    w = 0.1 * jax.random.normal(k[5], (16, 7, 4, 4), jnp.float32)
    b = 0.1 * jax.random.normal(k[6], (7,), jnp.float32)
    wm = jnp.concatenate([deconv_weight_matrix(w[:8]),
                          deconv_weight_matrix(w[8:])], axis=0).astype(jnp.bfloat16)
    got = deconv_up([x1.astype(jnp.bfloat16), x2.astype(jnp.bfloat16)], wm, b,
                    act_in="none", out_dtype=jnp.float32)
    wf = jnp.transpose(jnp.flip(_q(w), (2, 3)), (2, 3, 0, 1))        # HWIO
    ref = jax.lax.conv_general_dilated(
        _q(jnp.concatenate([x1, x2], axis=3)), wf, (1, 1), ((2, 2), (2, 2)),
        lhs_dilation=(2, 2), dimension_numbers=("NHWC", "HWIO", "NHWC")) + b
    assert float(jnp.max(jnp.abs(got - ref))) < 1e-2, "deconv lowering mismatch"


if __name__ == "__main__":
    _selfchecks()

    key = jax.random.PRNGKey(0)
    pkey, xkey, dkey = jax.random.split(key, 3)

    raw = init_params(pkey)
    params = pack_params(raw)            # one-time weight repack (bf16 matmul layout)

    # The 8-level UNet needs >= 256x256 spatial (8 stride-2 halvings); batch=1.
    x = jax.random.normal(xkey, (1, 3, 256, 256), jnp.float32)

    fwd = jax.jit(unet_forward)
    out = jax.block_until_ready(fwd(params, x, dkey))

    assert out.shape == (1, 3, 256, 256), out.shape
    assert out.dtype == jnp.float32
    assert bool(jnp.all(jnp.isfinite(out)))
    assert bool(jnp.all(jnp.abs(out) <= 1.0))       # tanh range
    print("KERNEL_OK")
</pallas_src>

<mosaic_0001>
module attributes {stable_mosaic.version = 11 : i64} {
  func.func @_mm_kernel_single(%arg0: i32, %arg1: i32, %arg2: memref<16x128xbf16, #tpu.memory_space<vmem>>, %arg3: memref<128x128xbf16, #tpu.memory_space<vmem>>, %arg4: memref<1x128xf32, #tpu.memory_space<vmem>>, %arg5: memref<16x128xf32, #tpu.memory_space<vmem>>) attributes {dimension_semantics = [#tpu.dimension_semantics<parallel>, #tpu.dimension_semantics<parallel>], iteration_bounds = array<i64: 1, 1>, scalar_prefetch = 0 : i64, scratch_operands = 0 : i64, tpu.core_type = #tpu.core_type<tc>, window_params = [{transform_indices = @transform_0, window_bounds = array<i64: 16, 128>}, {transform_indices = @transform_1, window_bounds = array<i64: 128, 128>}, {transform_indices = @transform_2, window_bounds = array<i64: 1, 128>}, {transform_indices = @transform_3, window_bounds = array<i64: 16, 128>}]} {
    %c0 = arith.constant 0 : index
    %c0_0 = arith.constant 0 : index
    %0 = vector.load %arg2[%c0, %c0_0] : memref<16x128xbf16, #tpu.memory_space<vmem>>, vector<16x128xbf16>
    %c0_1 = arith.constant 0 : index
    %c0_2 = arith.constant 0 : index
    %1 = vector.load %arg3[%c0_1, %c0_2] : memref<128x128xbf16, #tpu.memory_space<vmem>>, vector<128x128xbf16>
    %cst = arith.constant dense<0.000000e+00> : vector<16x128xf32>
    %2 = tpu.matmul %0, %1, %cst {dimension_numbers = #tpu.dot_dimension_numbers<[1], [0], [0], [1], [0, 0, 1, 1], [], []>} : vector<16x128xbf16>, vector<128x128xbf16>, vector<16x128xf32> -> vector<16x128xf32>
    %c0_3 = arith.constant 0 : index
    %c0_4 = arith.constant 0 : index
    %3 = vector.load %arg4[%c0_3, %c0_4] : memref<1x128xf32, #tpu.memory_space<vmem>>, vector<1x128xf32>
    %4 = vector.broadcast %3 : vector<1x128xf32> to vector<16x128xf32>
    %5 = arith.addf %2, %4 : vector<16x128xf32>
    %c0_5 = arith.constant 0 : index
    %c0_6 = arith.constant 0 : index
    %6 = vector.load %arg5[%c0_5, %c0_6] : memref<16x128xf32, #tpu.memory_space<vmem>>, vector<16x128xf32>
    tpu.vector_store %arg5[%c0_5, %c0_6], %5 {strides = array<i32>} : memref<16x128xf32, #tpu.memory_space<vmem>>, vector<16x128xf32>,
    return
  }
  func.func @transform_0(%arg0: i32, %arg1: i32) -> (i32, i32) {
    %c0_i32 = arith.constant 0 : i32
    %c0_i32_0 = arith.constant 0 : i32
    return %arg0, %c0_i32 : i32, i32
  }
  func.func @transform_1(%arg0: i32, %arg1: i32) -> (i32, i32) {
    %c0_i32 = arith.constant 0 : i32
    %c0_i32_0 = arith.constant 0 : i32
    return %c0_i32, %arg1 : i32, i32
  }
  func.func @transform_2(%arg0: i32, %arg1: i32) -> (i32, i32) {
    %c0_i32 = arith.constant 0 : i32
    %c0_i32_0 = arith.constant 0 : i32
    return %c0_i32, %arg1 : i32, i32
  }
  func.func @transform_3(%arg0: i32, %arg1: i32) -> (i32, i32) {
    %c0_i32 = arith.constant 0 : i32
    return %arg0, %arg1 : i32, i32
  }
}

</mosaic_0001>

<llo_original>
// kernel: tpu_custom_call.1
$region0: #{tpu_custom_call.1}
  #allocation0 [shape = 'u32[]', space=smem, size = 0x4, offset = 0x4, fixed_abs, tag = 'smem constant byte address 0x4 - core index']
  #allocation1 [shape = 'u32[72,128]{1,0:T(1,128)}', space=vmem, size = 0x9000, scoped, tag = 'internal scratch']
  %s0 = inlined_call_operand.hbm [shape: bf16[16,128], index: 0, kind: input, shape index: {}]
  %s1 = inlined_call_operand.hbm [shape: bf16[128,128], index: 1, kind: input, shape index: {}]
  %s2 = inlined_call_operand.vmem [shape: f32[1,128], index: 2, kind: input, shape index: {}]
  %s3 = inlined_call_operand.hbm [shape: f32[16,128], index: 3, kind: output, shape index: {}]
  %s4 = sld [smem:[#allocation0]]
  $region30: #{tpu_custom_call.1} parent=0
    _
  %s6 = ssub.s32 1, %s4
  %s7 = scalar_select 0, %s6, %s4
  $region1: #{tpu_custom_call.1} parent=0
    #allocation2 [shape = 'u8[4096]{0}', space=vmem, size = 0x1000, scoped, tag = 'input window, operand 0, single buffered']
    #allocation3 [shape = 's32[1]{0}', space=sflag, size = 0x4, scoped, tag = 'scoped memory for tpu_custom_call.1']
    #allocation4 [shape = 's32[1]{0}', space=sflag, size = 0x4, scoped, tag = 'scoped memory for tpu_custom_call.1']
    #allocation5 [shape = 'u8[32768]{0}', space=vmem, size = 0x8000, scoped, tag = 'input window, operand 1, single buffered']
    #allocation6 [shape = 's32[1]{0}', space=sflag, size = 0x4, scoped, tag = 'scoped memory for tpu_custom_call.1']
    #allocation7 [shape = 'u8[8192]{0}', space=vmem, size = 0x2000, scoped, tag = 'output window, operand 0, single buffered']
    %8 = vsyncpa [#allocation3], 0
    %9 = vsyncpa [#allocation6], 0
    %10 = vsyncpa [#allocation4], 0
    // Predicated region
    $region2: #{tpu_custom_call.1} parent=1 // pred_check
      _
    $region3: #{tpu_custom_call.1} parent=1 // pred_check_branch
      %12 = sbr.rel (0) target = $region5
    $region4: #{tpu_custom_call.1} parent=1 // pred_region
      %14 = vsyncadd [#allocation3], 0
      %s15 = sshll.u32 %s0, 4
      %s16 = int_to_ptr.hbm [resolvable:$true] %s15
      %s17 = sshll.u32 [#allocation2], 4
      %s18 = int_to_ptr.vmem [resolvable:$true] %s17
      %23 = dma.hbm_to_vmem [thread:$0]  %s16, 128, %s18, [#allocation3], 64, 64, 4
    $region5: #{tpu_custom_call.1} parent=1 // pred_fallthru
      _
    // Predicated region
    $region6: #{tpu_custom_call.1} parent=1 // pred_check
      _
    $region7: #{tpu_custom_call.1} parent=1 // pred_check_branch
      %25 = sbr.rel (0) target = $region9
    $region8: #{tpu_custom_call.1} parent=1 // pred_region
      %27 = vsyncadd [#allocation6], 0
      %s28 = sshll.u32 %s1, 4
      %s29 = int_to_ptr.hbm [resolvable:$true] %s28
      %s30 = sshll.u32 [#allocation5], 4
      %s31 = int_to_ptr.vmem [resolvable:$true] %s30
      %36 = dma.hbm_to_vmem [thread:$0]  %s29, 1024, %s31, [#allocation6], 64, 64, 4
    $region9: #{tpu_custom_call.1} parent=1 // pred_fallthru
      _
    // Predicated region
    $region10: #{tpu_custom_call.1} parent=1 // pred_check
      _
    $region11: #{tpu_custom_call.1} parent=1 // pred_check_branch
      %38 = sbr.rel (0) target = $region13
    $region12: #{tpu_custom_call.1} parent=1 // pred_region
      _
    $region13: #{tpu_custom_call.1} parent=1 // pred_fallthru
      _
    // Predicated region
    $region14: #{tpu_custom_call.1} parent=1 // pred_check
      _
    $region15: #{tpu_custom_call.1} parent=1 // pred_check_branch
      %40 = sbr.rel (0) target = $region17
    $region16: #{tpu_custom_call.1} parent=1 // pred_region
      %42 = dma.done [#allocation3], 128
    $region17: #{tpu_custom_call.1} parent=1 // pred_fallthru
      _
    // Predicated region
    $region18: #{tpu_custom_call.1} parent=1 // pred_check
      _
    $region19: #{tpu_custom_call.1} parent=1 // pred_check_branch
      %44 = sbr.rel (0) target = $region21
    $region20: #{tpu_custom_call.1} parent=1 // pred_region
      %46 = dma.done [#allocation6], 1024
    $region21: #{tpu_custom_call.1} parent=1 // pred_fallthru
      _
    %v47 = vld [vmem:[#allocation2] sm:$0xf]
    %v48 = vld [vmem:[#allocation2 + $0x4] sm:$0xf]
    %v49 = vld [vmem:[#allocation5] sm:$0xf]
    %v50 = vld [vmem:[#allocation5 + $0x4] sm:$0xf]
    %v51 = vld [vmem:[#allocation5 + $0x8] sm:$0xf]
    %v52 = vld [vmem:[#allocation5 + $0xc] sm:$0xf]
    %v53 = vld [vmem:[#allocation5 + $0x10] sm:$0xf]
    %v54 = vld [vmem:[#allocation5 + $0x14] sm:$0xf]
    %v55 = vld [vmem:[#allocation5 + $0x18] sm:$0xf]
    %v56 = vld [vmem:[#allocation5 + $0x1c] sm:$0xf]
    %v57 = vld [vmem:[#allocation5 + $0x20] sm:$0xf]
    %v58 = vld [vmem:[#allocation5 + $0x24] sm:$0xf]
    %v59 = vld [vmem:[#allocation5 + $0x28] sm:$0xf]
    %v60 = vld [vmem:[#allocation5 + $0x2c] sm:$0xf]
    %v61 = vld [vmem:[#allocation5 + $0x30] sm:$0xf]
    %v62 = vld [vmem:[#allocation5 + $0x34] sm:$0xf]
    %v63 = vld [vmem:[#allocation5 + $0x38] sm:$0xf]
    %v64 = vld [vmem:[#allocation5 + $0x3c] sm:$0xf]
    %v65 = vld [vmem:[%s2] sm:$0x1]
    %v67 = vperm.slane %v65, 0
    %v71 = vunpack.c.l.b16 %v47
    %v72 = vunpack.c.l.b16 %v48
    %v73 = vpack.c.b16 %v72, %v71
    %v91 = vunpack.c.l.b16 %v49
    %v92 = vunpack.c.l.b16 %v50
    %v93 = vunpack.c.l.b16 %v51
    %v94 = vunpack.c.l.b16 %v52
    %v95 = vunpack.c.l.b16 %v53
    %v96 = vunpack.c.l.b16 %v54
    %v97 = vunpack.c.l.b16 %v55
    %v98 = vunpack.c.l.b16 %v56
    %v99 = vunpack.c.l.b16 %v57
    %v100 = vunpack.c.l.b16 %v58
    %v101 = vunpack.c.l.b16 %v59
    %v102 = vunpack.c.l.b16 %v60
    %v103 = vunpack.c.l.b16 %v61
    %v104 = vunpack.c.l.b16 %v62
    %v105 = vunpack.c.l.b16 %v63
    %v106 = vunpack.c.l.b16 %v64
    %v107 = vpack.c.b16 %v92, %v91
    %v108 = vpack.c.b16 %v94, %v93
    %v109 = vpack.c.b16 %v96, %v95
    %v110 = vpack.c.b16 %v98, %v97
    %v111 = vpack.c.b16 %v100, %v99
    %v112 = vpack.c.b16 %v102, %v101
    %v113 = vpack.c.b16 %v104, %v103
    %v114 = vpack.c.b16 %v106, %v105
    %123 = vmatpush.bf16.msra.mxu0 %v114
    %124 = vmatpush.bf16.msra.mxu0 %v113
    %125 = vmatpush.bf16.msra.mxu0 %v112
    %126 = vmatpush.bf16.msra.mxu0 %v111
    %127 = vmatpush.bf16.msra.mxu0 %v110
    %128 = vmatpush.bf16.msra.mxu0 %v109
    %129 = vmatpush.bf16.msra.mxu0 %v108
    %130 = vmatpush.bf16.msra.mxu0 %v107
    %131 = vmatmul.bf16.gmra.mxu0 %v73
    %v132 = vpop.f32.mrf.mxu0
    %v133 = vadd.f32 %v67, %v132
    %v134 = vpop.f32.mrf.mxu0
    %v135 = vadd.f32 %v67, %v134
    %136 = vdwg.mxu0
    %137 = vst [vmem:[#allocation7] sm:$0xff] %v133
    %138 = vst [vmem:[#allocation7 + $0x8] sm:$0xff] %v135
    // Predicated region
    $region22: #{tpu_custom_call.1} parent=1 // pred_check
      _
    $region23: #{tpu_custom_call.1} parent=1 // pred_check_branch
      %140 = sbr.rel (0) target = $region25
    $region24: #{tpu_custom_call.1} parent=1 // pred_region
      %142 = vsyncadd [#allocation4], 0
      %s143 = sshll.u32 [#allocation7], 4
      %s144 = int_to_ptr.vmem [resolvable:$true] %s143
      %s145 = sshll.u32 %s3, 4
      %s146 = int_to_ptr.hbm [resolvable:$true] %s145
      %151 = dma.vmem_to_hbm [thread:$0]  %s144, 256, %s146, [#allocation4], 128, 128, 8
    $region25: #{tpu_custom_call.1} parent=1 // pred_fallthru
      _
    // Predicated region
    $region26: #{tpu_custom_call.1} parent=1 // pred_check
      _
    $region27: #{tpu_custom_call.1} parent=1 // pred_check_branch
      %153 = sbr.rel (0) target = $region29
    $region28: #{tpu_custom_call.1} parent=1 // pred_region
      %155 = dma.done [#allocation4], 256
    $region29: #{tpu_custom_call.1} parent=1 // pred_fallthru
      _
    %156 = vsyncpa [#allocation3], 1
    %157 = vsyncpa [#allocation6], 1
    %158 = vsyncpa [#allocation4], 1

</llo_original>
